<compile_context>
chip_gen: v7x
topology: tpu7x:2x2x1
jax: 0.10.0
libtpu: 0.0.40
codegen_flags: <defaults>
</compile_context>

<pallas_src>
import functools

import jax
import jax.numpy as jnp
from jax.experimental import pallas as pl
from jax.experimental.pallas import tpu as pltpu

# ----- static model hyper-parameters (mirroring TextCNN.__init__ / data_loader) -----
VOCAB_SIZE = 16            # 16 unique words in the toy corpus
EMB_SIZE = 2               # embedding_size
SEQ_LEN = 3                # every sentence has 3 words
OUT_CH = 3                 # output_channel
KH, KW = 2, EMB_SIZE       # Conv2d kernel (2, embedding_size)
H_OUT = SEQ_LEN - KH + 1   # = 2 conv rows, MaxPool2d((2,1)) collapses them to 1
NUM_CLASSES = 2

PACK_ROWS = 8 * H_OUT                   # 16: window h lives in rows [8h, 8h+OUT_CH)
PACK_COLS = SEQ_LEN * VOCAB_SIZE        # 48
FC_PACK = NUM_CLASSES * (OUT_CH + 1)    # 8 scalars: [w_c0 w_c1 w_c2 b] per class

LANES = 128
MAX_BLOCK_B = 1024


def textcnn_kernel(xs_ref, w_ref, fc_ref, out_ref):
    """Fused embedding(one-hot matmul) + conv + ReLU + maxpool + linear.

    xs_ref  : [SEQ_LEN, BT] int32, xs[s, b] = s*VOCAB_SIZE + token_id[b, s]
    w_ref   : [PACK_ROWS, PACK_COLS] f32 packed conv weights (bias folded in);
              window h=0 in rows 0..2, window h=1 in rows 8..10, rest zero.
    fc_ref  : [FC_PACK] f32 in SMEM: [fc_w[c,0..2], fc_b[c]] for c = 0, 1
    out_ref : [NUM_CLASSES, BT]  (batch on the lane axis)
    """
    bt = xs_ref.shape[1]
    xs = xs_ref[...]                                                    # [S, BT] int32

    # One-hot over the joint (seq-position, token) axis: OR-fold 3 compares, cast once.
    r = jax.lax.broadcasted_iota(jnp.int32, (PACK_COLS, bt), 0)
    m = xs[0:1, :] == r
    for s in range(1, SEQ_LEN):                                         # static, S = 3
        m = m | (xs[s:s + 1, :] == r)
    oh = m.astype(jnp.float32)                                          # [48, BT]

    # Single MXU push on the FULL weight tile (extra zero rows are free in the MXU).
    conv = jnp.dot(w_ref[...], oh, preferred_element_type=jnp.float32)  # [16, BT]

    # ReLU, then MaxPool2d((2,1)) as a max of two sublane-aligned 8-row groups.
    conv = jnp.maximum(conv, 0.0)
    pooled = jnp.maximum(conv[0:8, :], conv[8:16, :])                   # [8, BT], rows 0..2 valid

    # Linear(OUT_CH, NUM_CLASSES) on the VPU: SMEM scalars broadcast for free.
    rows = []
    for c in range(NUM_CLASSES):
        base = c * (OUT_CH + 1)
        acc = pooled[0:1, :] * fc_ref[base + 0]
        for k in range(1, OUT_CH):
            acc = acc + pooled[k:k + 1, :] * fc_ref[base + k]
        acc = acc + fc_ref[base + OUT_CH]                               # bias
        rows.append(acc)
    out_ref[...] = jnp.concatenate(rows, axis=0)                        # [NC, BT]


def pack_params(w_emb, conv_w, conv_b, fc_w, fc_b):
    """One-time parameter packing (hoisted out of the per-call path).

    conv_w : [OUT_CH, KH, KW] with KW == EMB_SIZE
    Returns:
      w_all  : [PACK_ROWS, PACK_COLS] f32  (combined embed*conv weight, bias folded)
      fc_all : [FC_PACK] f32               (fc weight rows with bias appended)
    """
    # Per-window-offset token contribution: T[kh][v, c] = <w_emb[v], conv_w[c, kh, :]>
    T = [w_emb @ conv_w[:, kh, :].T for kh in range(KH)]                # each [V, C]

    # W_big[s*V + v, h*C + c] = T[s-h][v, c] when 0 <= s-h < KH, else 0.
    W_big = jnp.zeros((PACK_COLS, H_OUT * OUT_CH), jnp.float32)
    for h in range(H_OUT):
        for kh in range(KH):
            s = h + kh
            W_big = W_big.at[s * VOCAB_SIZE:(s + 1) * VOCAB_SIZE,
                             h * OUT_CH:(h + 1) * OUT_CH].set(T[kh])
    # Fold the conv bias: every one-hot column has exactly one 1 in the s == 0 block.
    W_big = W_big.at[0:VOCAB_SIZE, :].add(jnp.tile(conv_b, H_OUT)[None, :])

    # Scatter W_big^T so each window's OUT_CH rows sit in their own 8-sublane group.
    w_all = jnp.zeros((PACK_ROWS, PACK_COLS), jnp.float32)
    for h in range(H_OUT):
        w_all = w_all.at[h * 8:h * 8 + OUT_CH, :].set(
            W_big[:, h * OUT_CH:(h + 1) * OUT_CH].T)

    # fc weight with the bias appended as an extra column, flattened for SMEM.
    fc_all = jnp.concatenate([fc_w, fc_b[:, None]], axis=1).reshape(-1).astype(jnp.float32)
    return w_all, fc_all


@jax.jit
def textcnn_forward(x_idx, w_all, fc_all):
    """x_idx: [B, SEQ_LEN] int32 token ids. Returns [B, NUM_CLASSES]."""
    B = x_idx.shape[0]

    # Batch (lane-axis) tiling: pad B to a multiple of 128, block up to 1024 lanes.
    b_pad = -(-B // LANES) * LANES
    bt = min(b_pad, MAX_BLOCK_B)
    b_pad = -(-b_pad // bt) * bt
    grid = (b_pad // bt,)

    # Token ids with batch on the lane axis, offset by their sequence-position block.
    # TODO(synk): out-of-range / padding token ids silently drop their conv
    # contribution (unlike a real embedding gather) -- add pl.debug_check if needed.
    xs = x_idx.T.astype(jnp.int32) + \
        (jnp.arange(SEQ_LEN, dtype=jnp.int32) * VOCAB_SIZE)[:, None]    # [S, B]
    xs = jnp.pad(xs, ((0, 0), (0, b_pad - B)))                          # [S, B_pad]

    out_t = pl.pallas_call(
        textcnn_kernel,
        out_shape=jax.ShapeDtypeStruct((NUM_CLASSES, b_pad), jnp.float32),
        grid=grid,
        in_specs=[
            pl.BlockSpec((SEQ_LEN, bt), lambda i: (0, i)),              # token ids
            pl.BlockSpec((PACK_ROWS, PACK_COLS), lambda i: (0, 0)),     # packed conv weight
            pl.BlockSpec(memory_space=pltpu.MemorySpace.SMEM),          # fc scalars
        ],
        out_specs=pl.BlockSpec((NUM_CLASSES, bt), lambda i: (0, i)),
        compiler_params=pltpu.CompilerParams(
            dimension_semantics=("parallel",)),                          # v7x: 2 TCs split batch
    )(xs, w_all, fc_all)

    return out_t[:, :B].T                                                # [B, NC]


def reference_forward(x_idx, w_emb, conv_w, conv_b, fc_w, fc_b):
    """Plain-JAX reference reproducing the PyTorch forward for validation."""
    emb = w_emb[x_idx]                                                   # [B, S, E]
    B = emb.shape[0]
    outs = []
    for h in range(H_OUT):
        win = emb[:, h:h + KH, :].reshape(B, KH * KW)                    # [B, 4]
        outs.append(win @ conv_w.reshape(OUT_CH, KH * KW).T + conv_b)
    conved = jnp.stack(outs, axis=1)                                     # [B, H_OUT, C]
    conved = jnp.maximum(conved, 0.0)
    pooled = jnp.max(conved, axis=1)                                     # [B, C]
    return pooled @ fc_w.T + fc_b


if __name__ == "__main__":
    key = jax.random.PRNGKey(0)
    k_emb, k_cw, k_cb, k_fw, k_fb, k_x = jax.random.split(key, 6)

    # Deterministic synthetic parameters (shapes from the module's __init__).
    w_emb = jax.random.normal(k_emb, (VOCAB_SIZE, EMB_SIZE), jnp.float32)
    conv_w = 0.3 * jax.random.normal(k_cw, (OUT_CH, 1, KH, KW), jnp.float32)
    conv_b = 0.1 * jax.random.normal(k_cb, (OUT_CH,), jnp.float32)
    fc_w = 0.3 * jax.random.normal(k_fw, (NUM_CLASSES, OUT_CH), jnp.float32)
    fc_b = 0.1 * jax.random.normal(k_fb, (NUM_CLASSES,), jnp.float32)

    # Example input: batch of 6 sentences, 3 token ids each (like the toy corpus).
    x = jax.random.randint(k_x, (6, SEQ_LEN), 0, VOCAB_SIZE, dtype=jnp.int32)

    # Pack parameters ONCE (amortized across calls), then run the jitted forward.
    w_all, fc_all = pack_params(w_emb, conv_w.reshape(OUT_CH, KH, KW), conv_b, fc_w, fc_b)
    out = textcnn_forward(x, w_all, fc_all)
    out = jax.block_until_ready(out)

    ref = reference_forward(x, w_emb, conv_w.reshape(OUT_CH, KH, KW), conv_b, fc_w, fc_b)
    assert out.shape == (6, NUM_CLASSES)
    assert jnp.allclose(out, ref, atol=1e-5, rtol=1e-5), "mismatch vs reference"

    print("KERNEL_OK")
</pallas_src>

<mosaic_0001>
module attributes {stable_mosaic.version = 11 : i64} {
  func.func @textcnn_kernel(%arg0: i32, %arg1: memref<3x128xi32, #tpu.memory_space<vmem>>, %arg2: memref<16x48xf32, #tpu.memory_space<vmem>>, %arg3: memref<8xf32, #tpu.memory_space<smem>>, %arg4: memref<2x128xf32, #tpu.memory_space<vmem>>) attributes {dimension_semantics = [#tpu.dimension_semantics<parallel>], iteration_bounds = array<i64: 1>, scalar_prefetch = 0 : i64, scratch_operands = 0 : i64, tpu.core_type = #tpu.core_type<tc>, window_params = [{transform_indices = @transform_0, window_bounds = array<i64: 3, 128>}, {pipeline_mode = #tpu.pipeline_mode<synchronous>, transform_indices = @transform_1, window_bounds = array<i64: 16, 48>}, {transform_indices = @transform_2, window_bounds = array<i64: 8>}, {transform_indices = @transform_3, window_bounds = array<i64: 2, 128>}]} {
    %c0 = arith.constant 0 : index
    %c0_0 = arith.constant 0 : index
    %0 = vector.load %arg1[%c0, %c0_0] : memref<3x128xi32, #tpu.memory_space<vmem>>, vector<3x128xi32>
    %1 = tpu.iota {dimensions = array<i32: 0>} : vector<48x128xi32>
    %2 = vector.extract_strided_slice %0 {offsets = [0, 0], sizes = [1, 128], strides = [1, 1]} : vector<3x128xi32> to vector<1x128xi32>
    %3 = vector.broadcast %2 : vector<1x128xi32> to vector<48x128xi32>
    %4 = arith.cmpi eq, %3, %1 : vector<48x128xi32>
    %5 = vector.extract_strided_slice %0 {offsets = [1, 0], sizes = [1, 128], strides = [1, 1]} : vector<3x128xi32> to vector<1x128xi32>
    %6 = vector.broadcast %5 : vector<1x128xi32> to vector<48x128xi32>
    %7 = arith.cmpi eq, %6, %1 : vector<48x128xi32>
    %8 = arith.ori %4, %7 : vector<48x128xi1>
    %9 = vector.extract_strided_slice %0 {offsets = [2, 0], sizes = [1, 128], strides = [1, 1]} : vector<3x128xi32> to vector<1x128xi32>
    %10 = vector.broadcast %9 : vector<1x128xi32> to vector<48x128xi32>
    %11 = arith.cmpi eq, %10, %1 : vector<48x128xi32>
    %12 = arith.ori %8, %11 : vector<48x128xi1>
    %13 = arith.extui %12 : vector<48x128xi1> to vector<48x128xi32>
    %14 = arith.sitofp %13 : vector<48x128xi32> to vector<48x128xf32>
    %c0_1 = arith.constant 0 : index
    %c0_2 = arith.constant 0 : index
    %15 = vector.load %arg2[%c0_1, %c0_2] : memref<16x48xf32, #tpu.memory_space<vmem>>, vector<16x48xf32>
    %cst = arith.constant dense<0.000000e+00> : vector<16x128xf32>
    %16 = tpu.matmul %15, %14, %cst {dimension_numbers = #tpu.dot_dimension_numbers<[1], [0], [0], [1], [0, 0, 1, 1], [], []>} : vector<16x48xf32>, vector<48x128xf32>, vector<16x128xf32> -> vector<16x128xf32>
    %cst_3 = arith.constant 0.000000e+00 : f32
    %17 = vector.broadcast %cst_3 : f32 to vector<16x128xf32>
    %18 = arith.maximumf %16, %17 : vector<16x128xf32>
    %19 = vector.extract_strided_slice %18 {offsets = [0, 0], sizes = [8, 128], strides = [1, 1]} : vector<16x128xf32> to vector<8x128xf32>
    %20 = vector.extract_strided_slice %18 {offsets = [8, 0], sizes = [8, 128], strides = [1, 1]} : vector<16x128xf32> to vector<8x128xf32>
    %21 = arith.maximumf %19, %20 : vector<8x128xf32>
    %22 = vector.extract_strided_slice %21 {offsets = [0, 0], sizes = [1, 128], strides = [1, 1]} : vector<8x128xf32> to vector<1x128xf32>
    %c0_4 = arith.constant 0 : index
    %23 = memref.load %arg3[%c0_4] : memref<8xf32, #tpu.memory_space<smem>>
    %24 = vector.broadcast %23 : f32 to vector<1x128xf32>
    %25 = arith.mulf %22, %24 : vector<1x128xf32>
    %26 = vector.extract_strided_slice %21 {offsets = [1, 0], sizes = [1, 128], strides = [1, 1]} : vector<8x128xf32> to vector<1x128xf32>
    %c1 = arith.constant 1 : index
    %27 = memref.load %arg3[%c1] : memref<8xf32, #tpu.memory_space<smem>>
    %28 = vector.broadcast %27 : f32 to vector<1x128xf32>
    %29 = arith.mulf %26, %28 : vector<1x128xf32>
    %30 = arith.addf %25, %29 : vector<1x128xf32>
    %31 = vector.extract_strided_slice %21 {offsets = [2, 0], sizes = [1, 128], strides = [1, 1]} : vector<8x128xf32> to vector<1x128xf32>
    %c2 = arith.constant 2 : index
    %32 = memref.load %arg3[%c2] : memref<8xf32, #tpu.memory_space<smem>>
    %33 = vector.broadcast %32 : f32 to vector<1x128xf32>
    %34 = arith.mulf %31, %33 : vector<1x128xf32>
    %35 = arith.addf %30, %34 : vector<1x128xf32>
    %c3 = arith.constant 3 : index
    %36 = memref.load %arg3[%c3] : memref<8xf32, #tpu.memory_space<smem>>
    %37 = vector.broadcast %36 : f32 to vector<1x128xf32>
    %38 = arith.addf %35, %37 : vector<1x128xf32>
    %39 = vector.extract_strided_slice %21 {offsets = [0, 0], sizes = [1, 128], strides = [1, 1]} : vector<8x128xf32> to vector<1x128xf32>
    %c4 = arith.constant 4 : index
    %40 = memref.load %arg3[%c4] : memref<8xf32, #tpu.memory_space<smem>>
    %41 = vector.broadcast %40 : f32 to vector<1x128xf32>
    %42 = arith.mulf %39, %41 : vector<1x128xf32>
    %43 = vector.extract_strided_slice %21 {offsets = [1, 0], sizes = [1, 128], strides = [1, 1]} : vector<8x128xf32> to vector<1x128xf32>
    %c5 = arith.constant 5 : index
    %44 = memref.load %arg3[%c5] : memref<8xf32, #tpu.memory_space<smem>>
    %45 = vector.broadcast %44 : f32 to vector<1x128xf32>
    %46 = arith.mulf %43, %45 : vector<1x128xf32>
    %47 = arith.addf %42, %46 : vector<1x128xf32>
    %48 = vector.extract_strided_slice %21 {offsets = [2, 0], sizes = [1, 128], strides = [1, 1]} : vector<8x128xf32> to vector<1x128xf32>
    %c6 = arith.constant 6 : index
    %49 = memref.load %arg3[%c6] : memref<8xf32, #tpu.memory_space<smem>>
    %50 = vector.broadcast %49 : f32 to vector<1x128xf32>
    %51 = arith.mulf %48, %50 : vector<1x128xf32>
    %52 = arith.addf %47, %51 : vector<1x128xf32>
    %c7 = arith.constant 7 : index
    %53 = memref.load %arg3[%c7] : memref<8xf32, #tpu.memory_space<smem>>
    %54 = vector.broadcast %53 : f32 to vector<1x128xf32>
    %55 = arith.addf %52, %54 : vector<1x128xf32>
    %56 = tpu.concatenate %38, %55 in 0 : vector<1x128xf32>, vector<1x128xf32> -> vector<2x128xf32>
    %c0_5 = arith.constant 0 : index
    %c0_6 = arith.constant 0 : index
    %57 = vector.load %arg4[%c0_5, %c0_6] : memref<2x128xf32, #tpu.memory_space<vmem>>, vector<2x128xf32>
    tpu.vector_store %arg4[%c0_5, %c0_6], %56 {strides = array<i32>} : memref<2x128xf32, #tpu.memory_space<vmem>>, vector<2x128xf32>,
    return
  }
  func.func @transform_0(%arg0: i32) -> (i32, i32) {
    %c0_i32 = arith.constant 0 : i32
    %c0_i32_0 = arith.constant 0 : i32
    return %c0_i32, %arg0 : i32, i32
  }
  func.func @transform_1(%arg0: i32) -> (i32, i32) {
    %c0_i32 = arith.constant 0 : i32
    %c0_i32_0 = arith.constant 0 : i32
    %c0_i32_1 = arith.constant 0 : i32
    return %c0_i32, %c0_i32_0 : i32, i32
  }
  func.func @transform_2(%arg0: i32) -> i32 {
    %c0_i32 = arith.constant 0 : i32
    %c0_i32_0 = arith.constant 0 : i32
    return %c0_i32 : i32
  }
  func.func @transform_3(%arg0: i32) -> (i32, i32) {
    %c0_i32 = arith.constant 0 : i32
    %c0_i32_0 = arith.constant 0 : i32
    return %c0_i32, %arg0 : i32, i32
  }
}

</mosaic_0001>

<llo_original>
// kernel: textcnn_forward.1
$region0: #{textcnn_forward.1}
  #allocation0 [shape = 'u32[]', space=smem, size = 0x4, offset = 0x4, fixed_abs, tag = 'smem constant byte address 0x4 - core index']
  #allocation1 [shape = 'u32[144,128]{1,0:T(1,128)}', space=vmem, size = 0x12000, scoped, tag = 'internal scratch']
  %s0 = inlined_call_operand.vmem [shape: s32[3,128], index: 0, kind: input, shape index: {}]
  %s1 = inlined_call_operand.vmem [shape: f32[16,48], index: 1, kind: input, shape index: {}]
  %s2 = inlined_call_operand.vmem [shape: f32[8], index: 2, kind: input, shape index: {}]
  %s3 = inlined_call_operand.vmem [shape: f32[2,128], index: 3, kind: output, shape index: {}]
  %s4 = sld [smem:[#allocation0]]
  $region26: #{textcnn_forward.1} parent=0
    _
  %s6 = ssub.s32 1, %s4
  %s7 = scalar_select 0, %s6, %s4
  $region1: #{textcnn_forward.1} parent=0
    #allocation2 [shape = 'u8[512]{0}', space=smem, size = 0x200, scoped, tag = 'input window, operand 2, single buffered']
    #allocation3 [shape = 's32[1]{0}', space=sflag, size = 0x4, scoped, tag = 'scoped memory for textcnn_forward.1']
    %8 = vsyncpa [#allocation3], 0
    // Predicated region
    $region2: #{textcnn_forward.1} parent=1 // pred_check
      _
    $region3: #{textcnn_forward.1} parent=1 // pred_check_branch
      %10 = sbr.rel (0) target = $region5
    $region4: #{textcnn_forward.1} parent=1 // pred_region
      _
    $region5: #{textcnn_forward.1} parent=1 // pred_fallthru
      _
    // Predicated region
    $region6: #{textcnn_forward.1} parent=1 // pred_check
      _
    $region7: #{textcnn_forward.1} parent=1 // pred_check_branch
      %12 = sbr.rel (0) target = $region9
    $region8: #{textcnn_forward.1} parent=1 // pred_region
      _
    $region9: #{textcnn_forward.1} parent=1 // pred_fallthru
      _
    // Predicated region
    $region10: #{textcnn_forward.1} parent=1 // pred_check
      _
    $region11: #{textcnn_forward.1} parent=1 // pred_check_branch
      %14 = sbr.rel (0) target = $region13
    $region12: #{textcnn_forward.1} parent=1 // pred_region
      %s16 = ssub.s32 16, 16
      %17 = vsyncadd [#allocation3], %s16
      %s19 = sshll.u32 %s2, 4
      %s20 = int_to_ptr.vmem [resolvable:$true] %s19
      %22 = dma.vmem_to_smem %s20, 16, [#allocation2], [#allocation3]
    $region13: #{textcnn_forward.1} parent=1 // pred_fallthru
      _
    // Predicated region
    $region14: #{textcnn_forward.1} parent=1 // pred_check
      _
    $region15: #{textcnn_forward.1} parent=1 // pred_check_branch
      %24 = sbr.rel (0) target = $region17
    $region16: #{textcnn_forward.1} parent=1 // pred_region
      %25 = dma.done [#allocation3], 16
    $region17: #{textcnn_forward.1} parent=1 // pred_fallthru
      _
    %26 = sfence
    %v27 = vld [vmem:[%s0] sm:$0x7]
    %v28 = vlaneseq
    %v29 = vshrl.u32 %v28, 7
    %v30 = vadd.s32 %v29, 8
    %v31 = vadd.s32 %v29, 16
    %v32 = vadd.s32 %v29, 24
    %v33 = vadd.s32 %v29, 32
    %v34 = vadd.s32 %v29, 40
    %v35 = vlaneseq
    %v36 = vshrl.u32 %v35, 7
    %v37 = vsub.s32 0, %v36
    %v38 = vrot.slane %v27, %v37
    %vm39 = vcmp.eq.s32.totalorder %v38, %v29
    %vm40 = vcmp.eq.s32.totalorder %v38, %v30
    %vm41 = vcmp.eq.s32.totalorder %v38, %v31
    %vm42 = vcmp.eq.s32.totalorder %v38, %v32
    %vm43 = vcmp.eq.s32.totalorder %v38, %v33
    %vm44 = vcmp.eq.s32.totalorder %v38, %v34
    %v45 = vlaneseq
    %v46 = vshrl.u32 %v45, 7
    %v47 = vsub.s32 1, %v46
    %v48 = vrot.slane %v27, %v47
    %vm49 = vcmp.eq.s32.totalorder %v48, %v29
    %vm50 = vcmp.eq.s32.totalorder %v48, %v30
    %vm51 = vcmp.eq.s32.totalorder %v48, %v31
    %vm52 = vcmp.eq.s32.totalorder %v48, %v32
    %vm53 = vcmp.eq.s32.totalorder %v48, %v33
    %vm54 = vcmp.eq.s32.totalorder %v48, %v34
    %vm55 = vmor %vm39, %vm49
    %vm56 = vmor %vm40, %vm50
    %vm57 = vmor %vm41, %vm51
    %vm58 = vmor %vm42, %vm52
    %vm59 = vmor %vm43, %vm53
    %vm60 = vmor %vm44, %vm54
    %v61 = vlaneseq
    %v62 = vshrl.u32 %v61, 7
    %v63 = vsub.s32 2, %v62
    %v64 = vrot.slane %v27, %v63
    %vm65 = vcmp.eq.s32.totalorder %v64, %v29
    %vm66 = vcmp.eq.s32.totalorder %v64, %v30
    %vm67 = vcmp.eq.s32.totalorder %v64, %v31
    %vm68 = vcmp.eq.s32.totalorder %v64, %v32
    %vm69 = vcmp.eq.s32.totalorder %v64, %v33
    %vm70 = vcmp.eq.s32.totalorder %v64, %v34
    %vm71 = vmor %vm55, %vm65
    %vm72 = vmor %vm56, %vm66
    %vm73 = vmor %vm57, %vm67
    %vm74 = vmor %vm58, %vm68
    %vm75 = vmor %vm59, %vm69
    %vm76 = vmor %vm60, %vm70
    %v77 = vsel %vm71, 1, 0
    %v78 = vsel %vm72, 1, 0
    %v79 = vsel %vm73, 1, 0
    %v80 = vsel %vm74, 1, 0
    %v81 = vsel %vm75, 1, 0
    %v82 = vsel %vm76, 1, 0
    %v83 = vcvt.s32.f32 %v77
    %v84 = vcvt.s32.f32 %v78
    %v85 = vcvt.s32.f32 %v79
    %v86 = vcvt.s32.f32 %v80
    %v87 = vcvt.s32.f32 %v81
    %v88 = vcvt.s32.f32 %v82
    %v89 = vld [vmem:[%s1] sm:$0xff]
    %v90 = vld [vmem:[%s1 + $0x8] sm:$0xff]
    %vm91 = vcmask 392192
    %v93 = vsel %vm91, %v89, 0
    %v96 = vsel %vm91, %v90, 0
    %98 = vmatprep.subr.mxu0 0.0
    %99 = vmatpush1.msra.mxu0 %v83
    %100 = vmatprep.subr.mxu0 0.0
    %101 = vmatpush1.msra.mxu0 %v84
    %102 = vmatprep.subr.mxu0 0.0
    %103 = vmatpush1.msra.mxu0 %v85
    %104 = vmatprep.subr.mxu0 0.0
    %105 = vmatpush1.msra.mxu0 %v86
    %106 = vmatprep.subr.mxu0 0.0
    %107 = vmatpush1.msra.mxu0 %v87
    %108 = vmatprep.subr.mxu0 0.0
    %109 = vmatpush1.msra.mxu0 %v88
    %110 = vmatprep.subr.mxu0 0.0
    %111 = vmatpush1.msra.mxu0 0.0
    %112 = vmatprep.subr.mxu0 0.0
    %113 = vmatpush1.msra.mxu0 0.0
    %114 = vmatprep.subr.mxu0 0.0
    %115 = vmatpush1.msra.mxu0 0.0
    %116 = vmatprep.subr.mxu0 0.0
    %117 = vmatpush1.msra.mxu0 0.0
    %118 = vmatprep.subr.mxu0 0.0
    %119 = vmatpush1.msra.mxu0 0.0
    %120 = vmatprep.subr.mxu0 0.0
    %121 = vmatpush1.msra.mxu0 0.0
    %122 = vmatprep.subr.mxu0 0.0
    %123 = vmatpush1.msra.mxu0 0.0
    %124 = vmatprep.subr.mxu0 0.0
    %125 = vmatpush1.msra.mxu0 0.0
    %126 = vmatprep.subr.mxu0 0.0
    %127 = vmatpush1.msra.mxu0 0.0
    %128 = vmatprep.subr.mxu0 0.0
    %129 = vmatpush1.msra.mxu0 0.0
    %130 = vmatprep.subr.mxu0 0.0
    %131 = vmatpush1.msra.mxu0 0.0
    %132 = vmatprep.subr.mxu0 0.0
    %133 = vmatpush1.msra.mxu0 0.0
    %134 = vmatprep.subr.mxu0 0.0
    %135 = vmatpush1.msra.mxu0 0.0
    %136 = vmatprep.subr.mxu0 0.0
    %137 = vmatpush1.msra.mxu0 0.0
    %138 = vmatprep.subr.mxu0 0.0
    %139 = vmatpush1.msra.mxu0 0.0
    %140 = vmatprep.subr.mxu0 0.0
    %141 = vmatpush1.msra.mxu0 0.0
    %142 = vmatprep.subr.mxu0 0.0
    %143 = vmatpush1.msra.mxu0 0.0
    %144 = vmatprep.subr.mxu0 0.0
    %145 = vmatpush1.msra.mxu0 0.0
    %146 = vmatprep.subr.mxu0 0.0
    %147 = vmatpush1.msra.mxu0 0.0
    %148 = vmatprep.subr.mxu0 0.0
    %149 = vmatpush1.msra.mxu0 0.0
    %150 = vmatprep.subr.mxu0 0.0
    %151 = vmatpush1.msra.mxu0 0.0
    %152 = vmatprep.subr.mxu0 0.0
    %153 = vmatpush1.msra.mxu0 0.0
    %154 = vmatprep.subr.mxu0 0.0
    %155 = vmatpush1.msra.mxu0 0.0
    %156 = vmatprep.subr.mxu0 0.0
    %157 = vmatpush1.msra.mxu0 0.0
    %158 = vmatprep.subr.mxu0 0.0
    %159 = vmatpush1.msra.mxu0 0.0
    %160 = vmatprep.subr.mxu0 0.0
    %161 = vmatpush1.msra.mxu0 0.0
    %162 = vmatprep.mubr.f32.mxu0 0.0
    %163 = vmatmul.mubr.f32.gmra.mrb[0].mxu0 %v93
    %v164 = vpop.f32.mrb[0].mxu0
    %v165 = vadd.f32 0.0, %v164
    %v166 = vpop.f32.mrb[0].mxu0
    %167 = vmatprep.mubr.f32.mxu0 0.0
    %168 = vmatmul.mubr.f32.gmra.mrb[0].mxu0 %v96
    %v169 = vpop.f32.mrb[0].mxu0
    %v170 = vadd.f32 0.0, %v169
    %v171 = vpop.f32.mrb[0].mxu0
    %172 = vdwg.mxu0
    %v173 = vmax.f32 %v165, 0.0
    %v174 = vmax.f32 %v170, 0.0
    %v175 = vmax.f32 %v173, %v174
    %s176 = sld [smem:[#allocation2]]
    %v177 = vstv %s176
    %v178 = vmul.f32 %v175, %v177
    %s179 = sld [smem:[#allocation2 + $0x1]]
    %v180 = vstv %s179
    %v181 = vmul.f32 %v175, %v180
    %v183 = vrot.slane %v181, 1
    %v185 = vadd.f32 %v178, %v183
    %s186 = sld [smem:[#allocation2 + $0x2]]
    %v187 = vstv %s186
    %v188 = vmul.f32 %v175, %v187
    %v190 = vrot.slane %v188, 2
    %v192 = vadd.f32 %v185, %v190
    %s193 = sld [smem:[#allocation2 + $0x3]]
    %v194 = vstv %s193
    %v195 = vadd.f32 %v192, %v194
    %s196 = sld [smem:[#allocation2 + $0x4]]
    %v197 = vstv %s196
    %v198 = vmul.f32 %v175, %v197
    %s199 = sld [smem:[#allocation2 + $0x5]]
    %v200 = vstv %s199
    %v201 = vmul.f32 %v175, %v200
    %v203 = vrot.slane %v201, 1
    %v205 = vadd.f32 %v198, %v203
    %s206 = sld [smem:[#allocation2 + $0x6]]
    %v207 = vstv %s206
    %v208 = vmul.f32 %v175, %v207
    %v210 = vrot.slane %v208, 2
    %v212 = vadd.f32 %v205, %v210
    %s213 = sld [smem:[#allocation2 + $0x7]]
    %v214 = vstv %s213
    %v215 = vadd.f32 %v212, %v214
    %v217 = vrot.slane %v215, 7
    %vm219 = vcmask 1040384
    %v220 = vsel %vm219, %v195, %v217
    %221 = vst [vmem:[%s3] sm:$0x3] %v220
    // Predicated region
    $region18: #{textcnn_forward.1} parent=1 // pred_check
      _
    $region19: #{textcnn_forward.1} parent=1 // pred_check_branch
      %223 = sbr.rel (0) target = $region21
    $region20: #{textcnn_forward.1} parent=1 // pred_region
      _
    $region21: #{textcnn_forward.1} parent=1 // pred_fallthru
      _
    // Predicated region
    $region22: #{textcnn_forward.1} parent=1 // pred_check
      _
    $region23: #{textcnn_forward.1} parent=1 // pred_check_branch
      %225 = sbr.rel (0) target = $region25
    $region24: #{textcnn_forward.1} parent=1 // pred_region
      _
    $region25: #{textcnn_forward.1} parent=1 // pred_fallthru
      _
    %226 = vsyncpa [#allocation3], 1

</llo_original>
